<compile_context>
chip_gen: v6e
topology: v6e:2x2x1
jax: 0.10.0
libtpu: 0.0.40
codegen_flags: <defaults>
</compile_context>

<pallas_src>
import jax
import jax.numpy as jnp
from jax.experimental import pallas as pl
from jax.experimental.pallas import tpu as pltpu

NEG_SLOPE = 0.01  # torch.nn.LeakyReLU default
LANES = 128
TB_CAP = 2048


def _round_up(n, m):
    return ((n + m - 1) // m) * m


def mlp_kernel(x_ref, w1_ref, b1_ref, w2p_ref, w2n_ref, o_ref):
    # Layouts:
    #   x_ref, o_ref            : (1, TB)        batch tile on lanes
    #   w1_ref, b1_ref,
    #   w2p_ref, w2n_ref        : (H_pad, 128)   pre-broadcast, resident (index_map -> (0,0))
    w1 = w1_ref[...]          # (H_pad, 128)
    b1 = b1_ref[...]
    w2p = w2p_ref[...]        # w2           (b2 folded into one padded row)
    w2n = w2n_ref[...]        # 0.01 * w2    (first LeakyReLU folded into w2)

    tb = o_ref.shape[1]
    num_chunks = tb // LANES

    # Static Python loop over 128-lane chunks: each chunk's h block is computed
    # and reduced immediately, so the full (H_pad, TB) intermediate never exists.
    for c in range(num_chunks):
        j = c * LANES
        xc = x_ref[:, j:j + LANES]                       # (1, 128)
        z = w1 * xc + b1                                 # (H_pad, 128)  layer-1 pre-act
        contrib = z * jnp.where(z >= 0, w2p, w2n)        # = w2 * leaky(z)
        y = jnp.sum(contrib, axis=0, keepdims=True)      # (1, 128)  includes +b2 row
        y = jnp.where(y >= 0, y, NEG_SLOPE * y)          # second LeakyReLU
        o_ref[:, j:j + LANES] = y.astype(o_ref.dtype)


def prepare_params(w1, b1, w2, b2):
    """One-time parameter prep (off the hot path).

    PyTorch nn.Linear layout in: w1 (H, 1), b1 (H,), w2 (1, H), b2 (1,).
    Out: four (H_pad, 128) lane-broadcast tiles with:
      * H padded to a multiple of 8 (sublane granularity, not 128),
      * one extra row (w1=0, b1=1, w2=b2) that folds b2 into the reduction,
      * remaining padded rows all-zero (contribute exactly 0),
      * w2_pos / w2_neg = w2 and 0.01*w2 (first LeakyReLU folded into the select).
    """
    H, in_s = w1.shape
    out_s, H2 = w2.shape
    # TODO(synk): kernel is specialized to input_s == output_s == 1 (the shapes
    # fixed by NNRegressionModel.init_weight()); general shapes would use MXU matmuls.
    assert in_s == 1 and out_s == 1 and H2 == H

    H_pad = _round_up(H + 1, 8)  # +1 row for the folded b2

    w1f = jnp.asarray(w1, jnp.float32).reshape(H)
    b1f = jnp.asarray(b1, jnp.float32).reshape(H)
    w2f = jnp.asarray(w2, jnp.float32).reshape(H)
    b2f = jnp.asarray(b2, jnp.float32).reshape(())

    w1_col = jnp.zeros((H_pad,), jnp.float32).at[:H].set(w1f)                      # row H: 0
    b1_col = jnp.zeros((H_pad,), jnp.float32).at[:H].set(b1f).at[H].set(1.0)       # row H: z = 1
    w2_col = jnp.zeros((H_pad,), jnp.float32).at[:H].set(w2f).at[H].set(b2f)       # row H: +b2

    def bcast(col):
        return jnp.tile(col.reshape(H_pad, 1), (1, LANES))

    w1_b = bcast(w1_col)
    b1_b = bcast(b1_col)
    w2p_b = bcast(w2_col)
    w2n_b = bcast(NEG_SLOPE * w2_col)
    return w1_b, b1_b, w2p_b, w2n_b, H_pad


def nn_regression_forward(x, params):
    """x: (B, 1) -> (B, 1).  params from prepare_params()."""
    w1_b, b1_b, w2p_b, w2n_b, H_pad = params
    B = x.shape[0]

    # Batch tile on lanes. Large batches get >=2 grid steps (v7x: both TCs work),
    # tile capped at TB_CAP to amortize per-step overhead without bloating the
    # unrolled chunk loop. All sizes multiples of 128 -> unmasked lane-dense stores.
    B128 = _round_up(max(B, 1), LANES)
    half = ((B128 // 2) // LANES) * LANES
    TB = max(LANES, min(TB_CAP, half if half > 0 else B128))
    B_pad = _round_up(B128, TB)

    x_row = jnp.pad(jnp.asarray(x, jnp.float32).reshape(1, B),
                    ((0, 0), (0, B_pad - B)))

    out = pl.pallas_call(
        mlp_kernel,
        out_shape=jax.ShapeDtypeStruct((1, B_pad), jnp.float32),
        grid=(B_pad // TB,),
        in_specs=[
            pl.BlockSpec((1, TB), lambda i: (0, i)),           # x: batch-tiled
            pl.BlockSpec((H_pad, LANES), lambda i: (0, 0)),    # w1: resident
            pl.BlockSpec((H_pad, LANES), lambda i: (0, 0)),    # b1: resident
            pl.BlockSpec((H_pad, LANES), lambda i: (0, 0)),    # w2_pos: resident
            pl.BlockSpec((H_pad, LANES), lambda i: (0, 0)),    # w2_neg: resident
        ],
        out_specs=pl.BlockSpec((1, TB), lambda i: (0, i)),     # lane-dense output
        compiler_params=pltpu.CompilerParams(
            dimension_semantics=("parallel",)),                # batch axis parallel
    )(x_row, w1_b, b1_b, w2p_b, w2n_b)

    return out[0, :B].reshape(B, 1)


if __name__ == "__main__":
    # Shapes implied by init_weight(): input_s=1, hiden_s=100, output_s=1.
    batch, input_s, hidden_s, output_s = 8, 1, 100, 1

    key = jax.random.PRNGKey(0)
    kx, kw1, kb1, kw2, kb2 = jax.random.split(key, 5)

    x = jax.random.normal(kx, (batch, input_s), jnp.float32)
    # Deterministic synthetic parameters (PyTorch nn.Linear layout: (out, in)).
    w1 = jax.random.normal(kw1, (hidden_s, input_s), jnp.float32) * 0.1
    b1 = jax.random.normal(kb1, (hidden_s,), jnp.float32) * 0.1
    w2 = jax.random.normal(kw2, (output_s, hidden_s), jnp.float32) * 0.1
    b2 = jax.random.normal(kb2, (output_s,), jnp.float32) * 0.1

    params = prepare_params(w1, b1, w2, b2)   # one-time prep, off the hot path
    out = nn_regression_forward(x, params)
    out = jax.block_until_ready(out)

    # Reference check in plain JAX (same math, original layouts).
    h_ref = x @ w1.T + b1
    h_ref = jnp.where(h_ref >= 0, h_ref, NEG_SLOPE * h_ref)
    y_ref = h_ref @ w2.T + b2
    y_ref = jnp.where(y_ref >= 0, y_ref, NEG_SLOPE * y_ref)
    assert out.shape == (batch, output_s)
    assert jnp.allclose(out, y_ref, atol=1e-5, rtol=1e-5)

    print("KERNEL_OK")
</pallas_src>

<mosaic_0001>
module attributes {stable_mosaic.version = 11 : i64} {
  func.func @mlp_kernel(%arg0: i32, %arg1: memref<1x128xf32, #tpu.memory_space<vmem>>, %arg2: memref<104x128xf32, #tpu.memory_space<vmem>>, %arg3: memref<104x128xf32, #tpu.memory_space<vmem>>, %arg4: memref<104x128xf32, #tpu.memory_space<vmem>>, %arg5: memref<104x128xf32, #tpu.memory_space<vmem>>, %arg6: memref<1x128xf32, #tpu.memory_space<vmem>>) attributes {dimension_semantics = [#tpu.dimension_semantics<parallel>], iteration_bounds = array<i64: 1>, scalar_prefetch = 0 : i64, scratch_operands = 0 : i64, tpu.core_type = #tpu.core_type<tc>, window_params = [{transform_indices = @transform_0, window_bounds = array<i64: 1, 128>}, {pipeline_mode = #tpu.pipeline_mode<synchronous>, transform_indices = @transform_1, window_bounds = array<i64: 104, 128>}, {pipeline_mode = #tpu.pipeline_mode<synchronous>, transform_indices = @transform_2, window_bounds = array<i64: 104, 128>}, {pipeline_mode = #tpu.pipeline_mode<synchronous>, transform_indices = @transform_3, window_bounds = array<i64: 104, 128>}, {pipeline_mode = #tpu.pipeline_mode<synchronous>, transform_indices = @transform_4, window_bounds = array<i64: 104, 128>}, {transform_indices = @transform_5, window_bounds = array<i64: 1, 128>}]} {
    %c0 = arith.constant 0 : index
    %c0_0 = arith.constant 0 : index
    %0 = vector.load %arg2[%c0, %c0_0] : memref<104x128xf32, #tpu.memory_space<vmem>>, vector<104x128xf32>
    %c0_1 = arith.constant 0 : index
    %c0_2 = arith.constant 0 : index
    %1 = vector.load %arg3[%c0_1, %c0_2] : memref<104x128xf32, #tpu.memory_space<vmem>>, vector<104x128xf32>
    %c0_3 = arith.constant 0 : index
    %c0_4 = arith.constant 0 : index
    %2 = vector.load %arg4[%c0_3, %c0_4] : memref<104x128xf32, #tpu.memory_space<vmem>>, vector<104x128xf32>
    %c0_5 = arith.constant 0 : index
    %c0_6 = arith.constant 0 : index
    %3 = vector.load %arg5[%c0_5, %c0_6] : memref<104x128xf32, #tpu.memory_space<vmem>>, vector<104x128xf32>
    %c0_7 = arith.constant 0 : index
    %c0_8 = arith.constant 0 : index
    %4 = vector.load %arg1[%c0_7, %c0_8] : memref<1x128xf32, #tpu.memory_space<vmem>>, vector<1x128xf32>
    %5 = vector.broadcast %4 : vector<1x128xf32> to vector<104x128xf32>
    %6 = arith.mulf %0, %5 : vector<104x128xf32>
    %7 = arith.addf %6, %1 : vector<104x128xf32>
    %cst = arith.constant 0.000000e+00 : f32
    %8 = vector.broadcast %cst : f32 to vector<104x128xf32>
    %9 = arith.cmpf oge, %7, %8 : vector<104x128xf32>
    %10 = arith.select %9, %2, %3 : vector<104x128xi1>, vector<104x128xf32>
    %11 = arith.mulf %7, %10 : vector<104x128xf32>
    %cst_9 = arith.constant dense<0.000000e+00> : vector<128xf32>
    %12 = vector.multi_reduction <add>, %11, %cst_9 [0] : vector<104x128xf32> to vector<128xf32>
    %13 = vector.shape_cast %12 : vector<128xf32> to vector<1x128xf32>
    %cst_10 = arith.constant 0.000000e+00 : f32
    %14 = vector.broadcast %cst_10 : f32 to vector<1x128xf32>
    %15 = arith.cmpf oge, %13, %14 : vector<1x128xf32>
    %cst_11 = arith.constant 0.00999999977 : f32
    %16 = vector.broadcast %cst_11 : f32 to vector<1x128xf32>
    %17 = arith.mulf %16, %13 : vector<1x128xf32>
    %18 = arith.select %15, %13, %17 : vector<1x128xi1>, vector<1x128xf32>
    %c0_12 = arith.constant 0 : index
    %c0_13 = arith.constant 0 : index
    %19 = vector.load %arg6[%c0_12, %c0_13] : memref<1x128xf32, #tpu.memory_space<vmem>>, vector<1x128xf32>
    tpu.vector_store %arg6[%c0_12, %c0_13], %18 {strides = array<i32>} : memref<1x128xf32, #tpu.memory_space<vmem>>, vector<1x128xf32>,
    return
  }
  func.func @transform_0(%arg0: i32) -> (i32, i32) {
    %c0_i32 = arith.constant 0 : i32
    %c0_i32_0 = arith.constant 0 : i32
    return %c0_i32, %arg0 : i32, i32
  }
  func.func @transform_1(%arg0: i32) -> (i32, i32) {
    %c0_i32 = arith.constant 0 : i32
    %c0_i32_0 = arith.constant 0 : i32
    %c0_i32_1 = arith.constant 0 : i32
    return %c0_i32, %c0_i32_0 : i32, i32
  }
  func.func @transform_2(%arg0: i32) -> (i32, i32) {
    %c0_i32 = arith.constant 0 : i32
    %c0_i32_0 = arith.constant 0 : i32
    %c0_i32_1 = arith.constant 0 : i32
    return %c0_i32, %c0_i32_0 : i32, i32
  }
  func.func @transform_3(%arg0: i32) -> (i32, i32) {
    %c0_i32 = arith.constant 0 : i32
    %c0_i32_0 = arith.constant 0 : i32
    %c0_i32_1 = arith.constant 0 : i32
    return %c0_i32, %c0_i32_0 : i32, i32
  }
  func.func @transform_4(%arg0: i32) -> (i32, i32) {
    %c0_i32 = arith.constant 0 : i32
    %c0_i32_0 = arith.constant 0 : i32
    %c0_i32_1 = arith.constant 0 : i32
    return %c0_i32, %c0_i32_0 : i32, i32
  }
  func.func @transform_5(%arg0: i32) -> (i32, i32) {
    %c0_i32 = arith.constant 0 : i32
    %c0_i32_0 = arith.constant 0 : i32
    return %c0_i32, %arg0 : i32, i32
  }
}

</mosaic_0001>

<llo_original>
// kernel: tpu_custom_call.1
$region0: #{tpu_custom_call.1}
  #allocation0 [shape = 'u32[]', space=smem, size = 0x4, offset = 0x4, fixed_abs, tag = 'smem constant byte address 0x4 - core index']
  #allocation1 [shape = 'u32[144,128]{1,0:T(1,128)}', space=vmem, size = 0x12000, scoped, tag = 'internal scratch']
  %s0 = inlined_call_operand.hbm [shape: f32[1,128], index: 0, kind: input, shape index: {}]
  %s1 = inlined_call_operand.hbm [shape: f32[104,128], index: 1, kind: input, shape index: {}]
  %s2 = inlined_call_operand.hbm [shape: f32[104,128], index: 2, kind: input, shape index: {}]
  %s3 = inlined_call_operand.hbm [shape: f32[104,128], index: 3, kind: input, shape index: {}]
  %s4 = inlined_call_operand.hbm [shape: f32[104,128], index: 4, kind: input, shape index: {}]
  %s5 = inlined_call_operand.hbm [shape: f32[1,128], index: 5, kind: output, shape index: {}]
  %s6 = sld [smem:[#allocation0]]
  $region50: #{tpu_custom_call.1} parent=0
    _
  %s8 = ssub.s32 1, %s6
  %s9 = scalar_select 0, %s8, %s6
  $region1: #{tpu_custom_call.1} parent=0
    #allocation2 [shape = 'u8[512]{0}', space=vmem, size = 0x400, scoped, tag = 'input window, operand 0, single buffered']
    #allocation3 [shape = 's32[1]{0}', space=sflag, size = 0x4, scoped, tag = 'scoped memory for tpu_custom_call.1']
    #allocation4 [shape = 's32[1]{0}', space=sflag, size = 0x4, scoped, tag = 'scoped memory for tpu_custom_call.1']
    #allocation5 [shape = 'u8[53248]{0}', space=vmem, size = 0xd000, scoped, tag = 'input window, operand 1, single buffered']
    #allocation6 [shape = 's32[1]{0}', space=sflag, size = 0x4, scoped, tag = 'scoped memory for tpu_custom_call.1']
    #allocation7 [shape = 'u8[53248]{0}', space=vmem, size = 0xd000, scoped, tag = 'input window, operand 2, single buffered']
    #allocation8 [shape = 'u8[53248]{0}', space=vmem, size = 0xd000, scoped, tag = 'input window, operand 3, single buffered']
    #allocation9 [shape = 's32[1]{0}', space=sflag, size = 0x4, scoped, tag = 'scoped memory for tpu_custom_call.1']
    #allocation10 [shape = 'u8[53248]{0}', space=vmem, size = 0xd000, scoped, tag = 'input window, operand 4, single buffered']
    #allocation11 [shape = 'u8[512]{0}', space=vmem, size = 0x400, scoped, tag = 'output window, operand 0, single buffered']
    %10 = vsyncpa [#allocation3], 0
    %11 = vsyncpa [#allocation6], 0
    %12 = vsyncpa [#allocation9], 0
    %13 = vsyncpa [#allocation4], 0
    // Predicated region
    $region2: #{tpu_custom_call.1} parent=1 // pred_check
      _
    $region3: #{tpu_custom_call.1} parent=1 // pred_check_branch
      %15 = sbr.rel (0) target = $region5
    $region4: #{tpu_custom_call.1} parent=1 // pred_region
      %s17 = ssub.s32 16, 16
      %18 = vsyncadd [#allocation3], %s17
      %s20 = sshll.u32 [#allocation2], 4
      %s21 = int_to_ptr.vmem [resolvable:$true] %s20
      %23 = dma.hbm_to_vmem [thread:$0]  %s0, 16, %s21, [#allocation3]
    $region5: #{tpu_custom_call.1} parent=1 // pred_fallthru
      _
    // Predicated region
    $region6: #{tpu_custom_call.1} parent=1 // pred_check
      _
    $region7: #{tpu_custom_call.1} parent=1 // pred_check_branch
      %25 = sbr.rel (0) target = $region9
    $region8: #{tpu_custom_call.1} parent=1 // pred_region
      %s27 = ssub.s32 1664, 1664
      %28 = vsyncadd [#allocation6], %s27
      %s29 = sshll.u32 [#allocation5], 4
      %s30 = int_to_ptr.vmem [resolvable:$true] %s29
      %35 = dma.hbm_to_vmem [thread:$0]  %s1, 1664, %s30, [#allocation6], 128, 128, 8
    $region9: #{tpu_custom_call.1} parent=1 // pred_fallthru
      _
    // Predicated region
    $region10: #{tpu_custom_call.1} parent=1 // pred_check
      _
    $region11: #{tpu_custom_call.1} parent=1 // pred_check_branch
      %37 = sbr.rel (0) target = $region13
    $region12: #{tpu_custom_call.1} parent=1 // pred_region
      %s39 = ssub.s32 1664, 1664
      %40 = vsyncadd [#allocation6], %s39
      %s41 = sshll.u32 [#allocation7], 4
      %s42 = int_to_ptr.vmem [resolvable:$true] %s41
      %47 = dma.hbm_to_vmem [thread:$0]  %s2, 1664, %s42, [#allocation6], 128, 128, 8
    $region13: #{tpu_custom_call.1} parent=1 // pred_fallthru
      _
    // Predicated region
    $region14: #{tpu_custom_call.1} parent=1 // pred_check
      _
    $region15: #{tpu_custom_call.1} parent=1 // pred_check_branch
      %49 = sbr.rel (0) target = $region17
    $region16: #{tpu_custom_call.1} parent=1 // pred_region
      %s51 = ssub.s32 1664, 1664
      %52 = vsyncadd [#allocation9], %s51
      %s53 = sshll.u32 [#allocation8], 4
      %s54 = int_to_ptr.vmem [resolvable:$true] %s53
      %59 = dma.hbm_to_vmem [thread:$0]  %s3, 1664, %s54, [#allocation9], 128, 128, 8
    $region17: #{tpu_custom_call.1} parent=1 // pred_fallthru
      _
    // Predicated region
    $region18: #{tpu_custom_call.1} parent=1 // pred_check
      _
    $region19: #{tpu_custom_call.1} parent=1 // pred_check_branch
      %61 = sbr.rel (0) target = $region21
    $region20: #{tpu_custom_call.1} parent=1 // pred_region
      %s63 = ssub.s32 1664, 1664
      %64 = vsyncadd [#allocation9], %s63
      %s65 = sshll.u32 [#allocation10], 4
      %s66 = int_to_ptr.vmem [resolvable:$true] %s65
      %71 = dma.hbm_to_vmem [thread:$0]  %s4, 1664, %s66, [#allocation9], 128, 128, 8
    $region21: #{tpu_custom_call.1} parent=1 // pred_fallthru
      _
    // Predicated region
    $region22: #{tpu_custom_call.1} parent=1 // pred_check
      _
    $region23: #{tpu_custom_call.1} parent=1 // pred_check_branch
      %73 = sbr.rel (0) target = $region25
    $region24: #{tpu_custom_call.1} parent=1 // pred_region
      %74 = dma.done [#allocation3], 16
    $region25: #{tpu_custom_call.1} parent=1 // pred_fallthru
      _
    // Predicated region
    $region26: #{tpu_custom_call.1} parent=1 // pred_check
      _
    $region27: #{tpu_custom_call.1} parent=1 // pred_check_branch
      %76 = sbr.rel (0) target = $region29
    $region28: #{tpu_custom_call.1} parent=1 // pred_region
      %77 = dma.done [#allocation6], 1664
    $region29: #{tpu_custom_call.1} parent=1 // pred_fallthru
      _
    // Predicated region
    $region30: #{tpu_custom_call.1} parent=1 // pred_check
      _
    $region31: #{tpu_custom_call.1} parent=1 // pred_check_branch
      %79 = sbr.rel (0) target = $region33
    $region32: #{tpu_custom_call.1} parent=1 // pred_region
      %80 = dma.done [#allocation6], 1664
    $region33: #{tpu_custom_call.1} parent=1 // pred_fallthru
      _
    // Predicated region
    $region34: #{tpu_custom_call.1} parent=1 // pred_check
      _
    $region35: #{tpu_custom_call.1} parent=1 // pred_check_branch
      %82 = sbr.rel (0) target = $region37
    $region36: #{tpu_custom_call.1} parent=1 // pred_region
      %83 = dma.done [#allocation9], 1664
    $region37: #{tpu_custom_call.1} parent=1 // pred_fallthru
      _
    // Predicated region
    $region38: #{tpu_custom_call.1} parent=1 // pred_check
      _
    $region39: #{tpu_custom_call.1} parent=1 // pred_check_branch
      %85 = sbr.rel (0) target = $region41
    $region40: #{tpu_custom_call.1} parent=1 // pred_region
      %86 = dma.done [#allocation9], 1664
    $region41: #{tpu_custom_call.1} parent=1 // pred_fallthru
      _
    %v87 = vld [vmem:[#allocation5] sm:$0xff]
    %v88 = vld [vmem:[#allocation5 + $0x8] sm:$0xff]
    %v89 = vld [vmem:[#allocation5 + $0x10] sm:$0xff]
    %v90 = vld [vmem:[#allocation5 + $0x18] sm:$0xff]
    %v91 = vld [vmem:[#allocation5 + $0x20] sm:$0xff]
    %v92 = vld [vmem:[#allocation5 + $0x28] sm:$0xff]
    %v93 = vld [vmem:[#allocation5 + $0x30] sm:$0xff]
    %v94 = vld [vmem:[#allocation5 + $0x38] sm:$0xff]
    %v95 = vld [vmem:[#allocation5 + $0x40] sm:$0xff]
    %v96 = vld [vmem:[#allocation5 + $0x48] sm:$0xff]
    %v97 = vld [vmem:[#allocation5 + $0x50] sm:$0xff]
    %v98 = vld [vmem:[#allocation5 + $0x58] sm:$0xff]
    %v99 = vld [vmem:[#allocation5 + $0x60] sm:$0xff]
    %v100 = vld [vmem:[#allocation7] sm:$0xff]
    %v101 = vld [vmem:[#allocation7 + $0x8] sm:$0xff]
    %v102 = vld [vmem:[#allocation7 + $0x10] sm:$0xff]
    %v103 = vld [vmem:[#allocation7 + $0x18] sm:$0xff]
    %v104 = vld [vmem:[#allocation7 + $0x20] sm:$0xff]
    %v105 = vld [vmem:[#allocation7 + $0x28] sm:$0xff]
    %v106 = vld [vmem:[#allocation7 + $0x30] sm:$0xff]
    %v107 = vld [vmem:[#allocation7 + $0x38] sm:$0xff]
    %v108 = vld [vmem:[#allocation7 + $0x40] sm:$0xff]
    %v109 = vld [vmem:[#allocation7 + $0x48] sm:$0xff]
    %v110 = vld [vmem:[#allocation7 + $0x50] sm:$0xff]
    %v111 = vld [vmem:[#allocation7 + $0x58] sm:$0xff]
    %v112 = vld [vmem:[#allocation7 + $0x60] sm:$0xff]
    %v113 = vld [vmem:[#allocation8] sm:$0xff]
    %v114 = vld [vmem:[#allocation8 + $0x8] sm:$0xff]
    %v115 = vld [vmem:[#allocation8 + $0x10] sm:$0xff]
    %v116 = vld [vmem:[#allocation8 + $0x18] sm:$0xff]
    %v117 = vld [vmem:[#allocation8 + $0x20] sm:$0xff]
    %v118 = vld [vmem:[#allocation8 + $0x28] sm:$0xff]
    %v119 = vld [vmem:[#allocation8 + $0x30] sm:$0xff]
    %v120 = vld [vmem:[#allocation8 + $0x38] sm:$0xff]
    %v121 = vld [vmem:[#allocation8 + $0x40] sm:$0xff]
    %v122 = vld [vmem:[#allocation8 + $0x48] sm:$0xff]
    %v123 = vld [vmem:[#allocation8 + $0x50] sm:$0xff]
    %v124 = vld [vmem:[#allocation8 + $0x58] sm:$0xff]
    %v125 = vld [vmem:[#allocation8 + $0x60] sm:$0xff]
    %v126 = vld [vmem:[#allocation10] sm:$0xff]
    %v127 = vld [vmem:[#allocation10 + $0x8] sm:$0xff]
    %v128 = vld [vmem:[#allocation10 + $0x10] sm:$0xff]
    %v129 = vld [vmem:[#allocation10 + $0x18] sm:$0xff]
    %v130 = vld [vmem:[#allocation10 + $0x20] sm:$0xff]
    %v131 = vld [vmem:[#allocation10 + $0x28] sm:$0xff]
    %v132 = vld [vmem:[#allocation10 + $0x30] sm:$0xff]
    %v133 = vld [vmem:[#allocation10 + $0x38] sm:$0xff]
    %v134 = vld [vmem:[#allocation10 + $0x40] sm:$0xff]
    %v135 = vld [vmem:[#allocation10 + $0x48] sm:$0xff]
    %v136 = vld [vmem:[#allocation10 + $0x50] sm:$0xff]
    %v137 = vld [vmem:[#allocation10 + $0x58] sm:$0xff]
    %v138 = vld [vmem:[#allocation10 + $0x60] sm:$0xff]
    %v139 = vld [vmem:[#allocation2] sm:$0x1]
    %v141 = vlaneseq
    %v142 = vshrl.u32 %v141, 7
    %v143 = vsub.s32 0, %v142
    %v144 = vrot.slane %v139, %v143
    %v146 = vmul.f32 %v87, %v144
    %v147 = vmul.f32 %v88, %v144
    %v148 = vmul.f32 %v89, %v144
    %v149 = vmul.f32 %v90, %v144
    %v150 = vmul.f32 %v91, %v144
    %v151 = vmul.f32 %v92, %v144
    %v152 = vmul.f32 %v93, %v144
    %v153 = vmul.f32 %v94, %v144
    %v154 = vmul.f32 %v95, %v144
    %v155 = vmul.f32 %v96, %v144
    %v156 = vmul.f32 %v97, %v144
    %v157 = vmul.f32 %v98, %v144
    %v158 = vmul.f32 %v99, %v144
    %v159 = vadd.f32 %v146, %v100
    %v160 = vadd.f32 %v147, %v101
    %v161 = vadd.f32 %v148, %v102
    %v162 = vadd.f32 %v149, %v103
    %v163 = vadd.f32 %v150, %v104
    %v164 = vadd.f32 %v151, %v105
    %v165 = vadd.f32 %v152, %v106
    %v166 = vadd.f32 %v153, %v107
    %v167 = vadd.f32 %v154, %v108
    %v168 = vadd.f32 %v155, %v109
    %v169 = vadd.f32 %v156, %v110
    %v170 = vadd.f32 %v157, %v111
    %v171 = vadd.f32 %v158, %v112
    %vm172 = vcmp.ge.f32.partialorder %v159, 0.0
    %vm173 = vcmp.ge.f32.partialorder %v160, 0.0
    %vm174 = vcmp.ge.f32.partialorder %v161, 0.0
    %vm175 = vcmp.ge.f32.partialorder %v162, 0.0
    %vm176 = vcmp.ge.f32.partialorder %v163, 0.0
    %vm177 = vcmp.ge.f32.partialorder %v164, 0.0
    %vm178 = vcmp.ge.f32.partialorder %v165, 0.0
    %vm179 = vcmp.ge.f32.partialorder %v166, 0.0
    %vm180 = vcmp.ge.f32.partialorder %v167, 0.0
    %vm181 = vcmp.ge.f32.partialorder %v168, 0.0
    %vm182 = vcmp.ge.f32.partialorder %v169, 0.0
    %vm183 = vcmp.ge.f32.partialorder %v170, 0.0
    %vm184 = vcmp.ge.f32.partialorder %v171, 0.0
    %v185 = vsel %vm172, %v113, %v126
    %v186 = vsel %vm173, %v114, %v127
    %v187 = vsel %vm174, %v115, %v128
    %v188 = vsel %vm175, %v116, %v129
    %v189 = vsel %vm176, %v117, %v130
    %v190 = vsel %vm177, %v118, %v131
    %v191 = vsel %vm178, %v119, %v132
    %v192 = vsel %vm179, %v120, %v133
    %v193 = vsel %vm180, %v121, %v134
    %v194 = vsel %vm181, %v122, %v135
    %v195 = vsel %vm182, %v123, %v136
    %v196 = vsel %vm183, %v124, %v137
    %v197 = vsel %vm184, %v125, %v138
    %v198 = vmul.f32 %v159, %v185
    %v199 = vmul.f32 %v160, %v186
    %v200 = vmul.f32 %v161, %v187
    %v201 = vmul.f32 %v162, %v188
    %v202 = vmul.f32 %v163, %v189
    %v203 = vmul.f32 %v164, %v190
    %v204 = vmul.f32 %v165, %v191
    %v205 = vmul.f32 %v166, %v192
    %v206 = vmul.f32 %v167, %v193
    %v207 = vmul.f32 %v168, %v194
    %v208 = vmul.f32 %v169, %v195
    %v209 = vmul.f32 %v170, %v196
    %v210 = vmul.f32 %v171, %v197
    %v211 = vadd.f32 %v198, %v199
    %v212 = vadd.f32 %v211, %v200
    %v213 = vadd.f32 %v212, %v201
    %v214 = vadd.f32 %v213, %v202
    %v215 = vadd.f32 %v214, %v203
    %v216 = vadd.f32 %v215, %v204
    %v217 = vadd.f32 %v216, %v205
    %v218 = vadd.f32 %v217, %v206
    %v219 = vadd.f32 %v218, %v207
    %v220 = vadd.f32 %v219, %v208
    %v221 = vadd.f32 %v220, %v209
    %v222 = vadd.f32 %v221, %v210
    %v223 = vrot.slane %v222, 4
    %v224 = vadd.f32 %v222, %v223
    %v225 = vrot.slane %v224, 2
    %v226 = vadd.f32 %v224, %v225
    %v227 = vrot.slane %v226, 1
    %v228 = vadd.f32 %v226, %v227
    %vm229 = vcmp.ge.f32.partialorder %v228, 0.0
    %v230 = vmul.f32 %v228, 0.01
    %v231 = vsel %vm229, %v228, %v230
    %232 = vst [vmem:[#allocation11] sm:$0x1] %v231
    // Predicated region
    $region42: #{tpu_custom_call.1} parent=1 // pred_check
      _
    $region43: #{tpu_custom_call.1} parent=1 // pred_check_branch
      %234 = sbr.rel (0) target = $region45
    $region44: #{tpu_custom_call.1} parent=1 // pred_region
      %s236 = ssub.s32 16, 16
      %237 = vsyncadd [#allocation4], %s236
      %s239 = sshll.u32 [#allocation11], 4
      %s240 = int_to_ptr.vmem [resolvable:$true] %s239
      %242 = dma.vmem_to_hbm [thread:$0]  %s240, 16, %s5, [#allocation4]
    $region45: #{tpu_custom_call.1} parent=1 // pred_fallthru
      _
    // Predicated region
    $region46: #{tpu_custom_call.1} parent=1 // pred_check
      _
    $region47: #{tpu_custom_call.1} parent=1 // pred_check_branch
      %244 = sbr.rel (0) target = $region49
    $region48: #{tpu_custom_call.1} parent=1 // pred_region
      %245 = dma.done [#allocation4], 16
    $region49: #{tpu_custom_call.1} parent=1 // pred_fallthru
      _
    %246 = vsyncpa [#allocation3], 1
    %247 = vsyncpa [#allocation6], 1
    %248 = vsyncpa [#allocation9], 1
    %249 = vsyncpa [#allocation4], 1

</llo_original>
